<compile_context>
chip_gen: v7x
topology: tpu7x:2x2x1
jax: 0.10.0
libtpu: 0.0.40
codegen_flags: <defaults>
</compile_context>

<pallas_src>
import jax
import jax.numpy as jnp
import numpy as np
from jax.experimental import pallas as pl
from jax.experimental.pallas import tpu as pltpu


def _round_up(x, m):
    return ((x + m - 1) // m) * m


def _pick_tile(n, cap, align=128):
    """Largest lane-aligned tile <= cap that keeps padding small."""
    n_al = _round_up(n, align)
    if n_al <= cap:
        return n_al
    for t in range(cap, align - 1, -align):
        if n_al % t == 0:
            return t
    return cap


_VMEM_LIMIT_CACHE = [None]


def _vmem_limit_bytes():
    """Generation-aware scoped-VMEM budget (leave headroom below physical)."""
    if _VMEM_LIMIT_CACHE[0] is None:
        try:
            cap = int(pltpu.get_tpu_info().vmem_capacity_bytes)
        except Exception:
            cap = 64 * 1024 * 1024  # conservative fallback (v7x-sized)
        if cap >= 100 * 1024 * 1024:      # v5e / v6e: 128 MiB physical
            _VMEM_LIMIT_CACHE[0] = 100 * 1024 * 1024
        else:                              # v7x: 64 MiB physical
            _VMEM_LIMIT_CACHE[0] = 48 * 1024 * 1024
    return _VMEM_LIMIT_CACHE[0]


# ----------------------------------------------------------------------------
# Pallas kernel 1: per-mode complex channel contraction
#   out[b, o, m] = sum_i x[b, i, m] * w[i, o, m]   (complex)
# Re/Im packed on a leading size-2 axis. Lane axis = (padded) flattened mode
# axis. Reduction over Ci is an unrolled accumulation (peeled first channel),
# with an optional extra grid axis over Ci chunks accumulating into the
# resident f32 output block.
# ----------------------------------------------------------------------------
def _spectral_mul_kernel(x_ref, w_ref, o_ref):
    # x_ref: (2, 1, ci_chunk, tile_m)   [0]=re, [1]=im
    # w_ref: (2, ci_chunk, Co, tile_m)
    # o_ref: (2, 1, Co, tile_m)
    ci_chunk = x_ref.shape[2]
    xr = x_ref[0, 0]                     # (ci_chunk, tile_m)
    xi = x_ref[1, 0]

    # peel channel 0 into the accumulator init (no zeros materialization)
    xr0 = xr[0:1, :]                     # (1, tile_m) -> sublane broadcast
    xi0 = xi[0:1, :]
    wr0 = w_ref[0, 0]                    # (Co, tile_m)
    wi0 = w_ref[1, 0]
    acc_r = xr0 * wr0 - xi0 * wi0
    acc_i = xr0 * wi0 + xi0 * wr0

    for i in range(1, ci_chunk):         # static unroll over this Ci chunk
        xr_i = xr[i:i + 1, :]
        xi_i = xi[i:i + 1, :]
        wr_i = w_ref[0, i]
        wi_i = w_ref[1, i]
        acc_r = acc_r + xr_i * wr_i - xi_i * wi_i
        acc_i = acc_i + xr_i * wi_i + xi_i * wr_i

    k = pl.program_id(2)                 # Ci-chunk (reduction) axis, innermost

    @pl.when(k == 0)
    def _():
        o_ref[0, 0] = acc_r
        o_ref[1, 0] = acc_i

    @pl.when(k > 0)
    def _():
        o_ref[0, 0] = o_ref[0, 0] + acc_r
        o_ref[1, 0] = o_ref[1, 0] + acc_i


def spectral_mul(xr, xi, wr, wi, max_tile_m=1024):
    B, Ci, M = xr.shape
    Co = wr.shape[1]

    # Ci chunking: keep the (8,128)-rule happy (chunk == full Ci, or mult of 8).
    if Ci <= 32:
        ci_chunk, Ci_pad = Ci, Ci
    else:
        ci_chunk = 32
        Ci_pad = _round_up(Ci, ci_chunk)

    # tile_m sized against the vreg file: the two f32 accumulators (Co, tile_m)
    # must fit comfortably (Co * tile_m <= 24576 f32 ~ 48 vregs).
    vreg_cap = max(128, (24576 // max(Co, 1)) // 128 * 128)
    tile_m = min(max_tile_m, vreg_cap, _round_up(M, 128))
    tile_m = max(128, (tile_m // 128) * 128)
    M_pad = _round_up(M, tile_m)

    # pack re/im on a leading size-2 axis: 2 input streams + 1 output stream
    x = jnp.stack([xr, xi], axis=0)      # (2, B, Ci, M)
    w = jnp.stack([wr, wi], axis=0)      # (2, Ci, Co, M)
    if M_pad != M or Ci_pad != Ci:
        x = jnp.pad(x, ((0, 0), (0, 0), (0, Ci_pad - Ci), (0, M_pad - M)))
        w = jnp.pad(w, ((0, 0), (0, Ci_pad - Ci), (0, 0), (0, M_pad - M)))

    n_m = M_pad // tile_m
    n_k = Ci_pad // ci_chunk

    # Grid = (mode tiles, batch, Ci chunks): weights depend only on (m, k), so
    # they are NOT re-DMAed across the inner batch iterations; the reduction
    # axis is last ('arbitrary') and accumulates into the resident output.
    x_spec = pl.BlockSpec((2, 1, ci_chunk, tile_m), lambda m, b, k: (0, b, k, m))
    w_spec = pl.BlockSpec((2, ci_chunk, Co, tile_m), lambda m, b, k: (0, k, 0, m))
    o_spec = pl.BlockSpec((2, 1, Co, tile_m), lambda m, b, k: (0, b, 0, m))

    out = pl.pallas_call(
        _spectral_mul_kernel,
        grid=(n_m, B, n_k),
        in_specs=[x_spec, w_spec],
        out_specs=o_spec,
        out_shape=jax.ShapeDtypeStruct((2, B, Co, M_pad), jnp.float32),
        compiler_params=pltpu.CompilerParams(
            dimension_semantics=("parallel", "parallel", "arbitrary"),
            vmem_limit_bytes=_vmem_limit_bytes()),
        cost_estimate=pl.CostEstimate(
            flops=8 * B * Ci_pad * Co * M_pad,
            transcendentals=0,
            # weights streamed once per mode tile (not per batch) after reorder
            bytes_accessed=4 * (2 * B * Ci_pad * M_pad
                                + 2 * Ci_pad * Co * M_pad
                                + 2 * B * Co * M_pad)),
    )(x, w)
    return out[0, :, :, :M], out[1, :, :, :M]


# ----------------------------------------------------------------------------
# Pallas kernel 2: 1x1-conv skip + residual add + exact GELU epilogue, in NCHW
# with the flattened spatial axis on lanes (lane-dense, no layout transposes).
#   y[b, o, s] = gelu( fno[b, o, s] + sum_i w_t[o, i] * x[b, i, s] + b[o] )
# ----------------------------------------------------------------------------
def _skip_add_gelu_kernel(x_ref, fno_ref, w_ref, b_ref, o_ref):
    cin = x_ref.shape[1]
    x = x_ref[0]                         # (Cin,  tile_s)
    fno = fno_ref[0]                     # (Cout, tile_s)
    w = w_ref[...]                       # (Cout, Cin)
    acc = fno + b_ref[...]               # (Cout, 1) broadcasts across lanes
    if cin <= 8:
        # tiny channel count: VPU broadcast-FMAs, keep the (mostly idle) MXU out
        for i in range(cin):
            acc = acc + w[:, i:i + 1] * x[i:i + 1, :]
    else:
        acc = acc + jnp.dot(w, x, preferred_element_type=jnp.float32)
    o_ref[0] = jax.nn.gelu(acc, approximate=False)   # matches torch F.gelu (erf)


def skip_add_gelu(x, x_fno, w_skip, b_skip, max_tile_s=8192):
    B, Cin, H, W = x.shape
    Cout = x_fno.shape[1]
    S = H * W
    x3 = x.reshape(B, Cin, S)            # contiguous reshape, no transpose
    fno3 = x_fno.reshape(B, Cout, S)

    tile_s = _pick_tile(S, max_tile_s)
    S_pad = _round_up(S, tile_s)
    if S_pad != S:
        pad = ((0, 0), (0, 0), (0, S_pad - S))
        x3 = jnp.pad(x3, pad)
        fno3 = jnp.pad(fno3, pad)

    w_t = jnp.transpose(w_skip)          # (Cout, Cin)
    b_col = b_skip.reshape(Cout, 1)

    # Grid = (spatial tiles, batch): tile axis leads so both v7x TensorCores
    # get work even when B == 1.
    out = pl.pallas_call(
        _skip_add_gelu_kernel,
        grid=(S_pad // tile_s, B),
        in_specs=[
            pl.BlockSpec((1, Cin, tile_s), lambda s, b: (b, 0, s)),
            pl.BlockSpec((1, Cout, tile_s), lambda s, b: (b, 0, s)),
            pl.BlockSpec((Cout, Cin), lambda s, b: (0, 0)),
            pl.BlockSpec((Cout, 1), lambda s, b: (0, 0)),
        ],
        out_specs=pl.BlockSpec((1, Cout, tile_s), lambda s, b: (b, 0, s)),
        out_shape=jax.ShapeDtypeStruct((B, Cout, S_pad), jnp.float32),
        compiler_params=pltpu.CompilerParams(
            dimension_semantics=("parallel", "parallel"),
            vmem_limit_bytes=_vmem_limit_bytes()),
        cost_estimate=pl.CostEstimate(
            flops=2 * B * S_pad * Cin * Cout + 12 * B * S_pad * Cout,
            transcendentals=B * S_pad * Cout,
            bytes_accessed=4 * (B * Cin * S_pad + 2 * B * Cout * S_pad
                                + Cin * Cout + Cout)),
    )(x3, fno3, w_t, b_col)
    return out[:, :, :S].reshape(B, Cout, H, W)


# ----------------------------------------------------------------------------
# Full forward of the sub-block (glue in plain JAX, hot paths in Pallas)
# ----------------------------------------------------------------------------
def fno_block_forward(x, params, modes1, modes2):
    B, Cin, H, W = x.shape
    Wf = W // 2 + 1
    Cout = params["w_spec_real"].shape[1]
    M = 2 * modes1 * modes2

    x = x.astype(jnp.float32)
    # TODO(synk): rfft2 / irfft2 have no clean Pallas equivalent; plain JAX glue.
    x_hat = jnp.fft.rfft2(x, axes=(-2, -1))                               # (B, Cin, H, Wf)

    # gather the kept low-frequency modes (classic FNO corner truncation)
    top = x_hat[:, :, :modes1, :modes2]
    bot = x_hat[:, :, -modes1:, :modes2]
    kept = jnp.concatenate([top, bot], axis=2)                            # (B, Cin, 2*m1, m2)
    xr = jnp.real(kept).reshape(B, Cin, M)
    xi = jnp.imag(kept).reshape(B, Cin, M)

    or_, oi_ = spectral_mul(xr, xi, params["w_spec_real"], params["w_spec_imag"])
    out_kept = (or_ + 1j * oi_).reshape(B, Cout, 2 * modes1, modes2)

    # assemble the full spectrum with concat/pad (no scatter into a fresh zeros buffer)
    zeros_mid = jnp.zeros((B, Cout, H - 2 * modes1, modes2), out_kept.dtype)
    rows = jnp.concatenate(
        [out_kept[:, :, :modes1], zeros_mid, out_kept[:, :, modes1:]], axis=2)
    out_hat = jnp.pad(rows, ((0, 0), (0, 0), (0, 0), (0, Wf - modes2)))
    x_fno = jnp.fft.irfft2(out_hat, s=(H, W), axes=(-2, -1)).astype(jnp.float32)

    # fused skip 1x1 conv + residual + GELU, NCHW preserved (spatial on lanes)
    return skip_add_gelu(x, x_fno, params["w_skip"], params["b_skip"])


# ----------------------------------------------------------------------------
# Pure-JAX reference (same math, no Pallas) for correctness checking
# ----------------------------------------------------------------------------
def fno_block_reference(x, params, modes1, modes2):
    B, Cin, H, W = x.shape
    Wf = W // 2 + 1
    Cout = params["w_spec_real"].shape[1]
    x_hat = jnp.fft.rfft2(x.astype(jnp.float32), axes=(-2, -1))
    top = x_hat[:, :, :modes1, :modes2]
    bot = x_hat[:, :, -modes1:, :modes2]
    kept = jnp.concatenate([top, bot], axis=2)
    w = (params["w_spec_real"] + 1j * params["w_spec_imag"]).reshape(
        Cin, Cout, 2 * modes1, modes2)
    out_kept = jnp.einsum("bixy,ioxy->boxy", kept, w)
    out_hat = jnp.zeros((B, Cout, H, Wf), dtype=jnp.complex64)
    out_hat = out_hat.at[:, :, :modes1, :modes2].set(out_kept[:, :, :modes1])
    out_hat = out_hat.at[:, :, -modes1:, :modes2].set(out_kept[:, :, modes1:])
    x_fno = jnp.fft.irfft2(out_hat, s=(H, W), axes=(-2, -1)).astype(jnp.float32)
    skip = jnp.einsum("bihw,io->bohw", x.astype(jnp.float32), params["w_skip"])
    skip = skip + params["b_skip"].reshape(1, Cout, 1, 1)
    return jax.nn.gelu(x_fno + skip, approximate=False)


if __name__ == "__main__":
    B, C, H, W = 2, 4, 16, 16          # batch=2, hidden channels=4, spatial=16x16
    modes1, modes2 = 4, 4              # kept Fourier modes
    Cin = Cout = C
    M = 2 * modes1 * modes2

    key = jax.random.PRNGKey(0)
    k_x, k_wr, k_wi, k_ws, k_bs = jax.random.split(key, 5)

    x = jax.random.normal(k_x, (B, C, H, W), dtype=jnp.float32)

    scale = 1.0 / (Cin * Cout)
    params = {
        "w_spec_real": scale * jax.random.normal(k_wr, (Cin, Cout, M), dtype=jnp.float32),
        "w_spec_imag": scale * jax.random.normal(k_wi, (Cin, Cout, M), dtype=jnp.float32),
        "w_skip": jax.random.normal(k_ws, (Cin, Cout), dtype=jnp.float32)
                  / np.sqrt(Cin),                                  # Conv2d(Cin,Cout,1) weight
        "b_skip": jax.random.normal(k_bs, (Cout,), dtype=jnp.float32) * 0.01,
    }

    y = fno_block_forward(x, params, modes1, modes2)
    y = jax.block_until_ready(y)

    y_ref = jax.block_until_ready(fno_block_reference(x, params, modes1, modes2))
    np.testing.assert_allclose(np.asarray(y), np.asarray(y_ref), rtol=1e-4, atol=1e-4)

    print("KERNEL_OK")
</pallas_src>

<mosaic_0001>
module attributes {stable_mosaic.version = 11 : i64} {
  func.func @_spectral_mul_kernel(%arg0: i32, %arg1: i32, %arg2: i32, %arg3: memref<2x1x4x128xf32, #tpu.memory_space<vmem>>, %arg4: memref<2x4x4x128xf32, #tpu.memory_space<vmem>>, %arg5: memref<2x1x4x128xf32, #tpu.memory_space<vmem>>) attributes {dimension_semantics = [#tpu.dimension_semantics<parallel>, #tpu.dimension_semantics<parallel>, #tpu.dimension_semantics<arbitrary>], iteration_bounds = array<i64: 1, 2, 1>, scalar_prefetch = 0 : i64, scratch_operands = 0 : i64, tpu.core_type = #tpu.core_type<tc>, window_params = [{transform_indices = @transform_0, window_bounds = array<i64: 2, 1, 4, 128>}, {transform_indices = @transform_1, window_bounds = array<i64: 2, 4, 4, 128>}, {transform_indices = @transform_2, window_bounds = array<i64: 2, 1, 4, 128>}]} {
    %c0 = arith.constant 0 : index
    %c0_0 = arith.constant 0 : index
    %c0_1 = arith.constant 0 : index
    %c0_2 = arith.constant 0 : index
    %0 = vector.load %arg3[%c0, %c0_0, %c0_1, %c0_2] : memref<2x1x4x128xf32, #tpu.memory_space<vmem>>, vector<1x1x4x128xf32>
    %1 = vector.shape_cast %0 : vector<1x1x4x128xf32> to vector<4x128xf32>
    %c1 = arith.constant 1 : index
    %c0_3 = arith.constant 0 : index
    %c0_4 = arith.constant 0 : index
    %c0_5 = arith.constant 0 : index
    %2 = vector.load %arg3[%c1, %c0_3, %c0_4, %c0_5] : memref<2x1x4x128xf32, #tpu.memory_space<vmem>>, vector<1x1x4x128xf32>
    %3 = vector.shape_cast %2 : vector<1x1x4x128xf32> to vector<4x128xf32>
    %4 = vector.extract_strided_slice %1 {offsets = [0, 0], sizes = [1, 128], strides = [1, 1]} : vector<4x128xf32> to vector<1x128xf32>
    %5 = vector.extract_strided_slice %3 {offsets = [0, 0], sizes = [1, 128], strides = [1, 1]} : vector<4x128xf32> to vector<1x128xf32>
    %c0_6 = arith.constant 0 : index
    %c0_7 = arith.constant 0 : index
    %c0_8 = arith.constant 0 : index
    %c0_9 = arith.constant 0 : index
    %6 = vector.load %arg4[%c0_6, %c0_7, %c0_8, %c0_9] : memref<2x4x4x128xf32, #tpu.memory_space<vmem>>, vector<1x1x4x128xf32>
    %7 = vector.shape_cast %6 : vector<1x1x4x128xf32> to vector<4x128xf32>
    %c1_10 = arith.constant 1 : index
    %c0_11 = arith.constant 0 : index
    %c0_12 = arith.constant 0 : index
    %c0_13 = arith.constant 0 : index
    %8 = vector.load %arg4[%c1_10, %c0_11, %c0_12, %c0_13] : memref<2x4x4x128xf32, #tpu.memory_space<vmem>>, vector<1x1x4x128xf32>
    %9 = vector.shape_cast %8 : vector<1x1x4x128xf32> to vector<4x128xf32>
    %10 = vector.broadcast %4 : vector<1x128xf32> to vector<4x128xf32>
    %11 = arith.mulf %10, %7 : vector<4x128xf32>
    %12 = vector.broadcast %5 : vector<1x128xf32> to vector<4x128xf32>
    %13 = arith.mulf %12, %9 : vector<4x128xf32>
    %14 = arith.subf %11, %13 : vector<4x128xf32>
    %15 = vector.broadcast %4 : vector<1x128xf32> to vector<4x128xf32>
    %16 = arith.mulf %15, %9 : vector<4x128xf32>
    %17 = vector.broadcast %5 : vector<1x128xf32> to vector<4x128xf32>
    %18 = arith.mulf %17, %7 : vector<4x128xf32>
    %19 = arith.addf %16, %18 : vector<4x128xf32>
    %20 = vector.extract_strided_slice %1 {offsets = [1, 0], sizes = [1, 128], strides = [1, 1]} : vector<4x128xf32> to vector<1x128xf32>
    %21 = vector.extract_strided_slice %3 {offsets = [1, 0], sizes = [1, 128], strides = [1, 1]} : vector<4x128xf32> to vector<1x128xf32>
    %c0_14 = arith.constant 0 : index
    %c1_15 = arith.constant 1 : index
    %c0_16 = arith.constant 0 : index
    %c0_17 = arith.constant 0 : index
    %22 = vector.load %arg4[%c0_14, %c1_15, %c0_16, %c0_17] : memref<2x4x4x128xf32, #tpu.memory_space<vmem>>, vector<1x1x4x128xf32>
    %23 = vector.shape_cast %22 : vector<1x1x4x128xf32> to vector<4x128xf32>
    %c1_18 = arith.constant 1 : index
    %c1_19 = arith.constant 1 : index
    %c0_20 = arith.constant 0 : index
    %c0_21 = arith.constant 0 : index
    %24 = vector.load %arg4[%c1_18, %c1_19, %c0_20, %c0_21] : memref<2x4x4x128xf32, #tpu.memory_space<vmem>>, vector<1x1x4x128xf32>
    %25 = vector.shape_cast %24 : vector<1x1x4x128xf32> to vector<4x128xf32>
    %26 = vector.broadcast %20 : vector<1x128xf32> to vector<4x128xf32>
    %27 = arith.mulf %26, %23 : vector<4x128xf32>
    %28 = arith.addf %14, %27 : vector<4x128xf32>
    %29 = vector.broadcast %21 : vector<1x128xf32> to vector<4x128xf32>
    %30 = arith.mulf %29, %25 : vector<4x128xf32>
    %31 = arith.subf %28, %30 : vector<4x128xf32>
    %32 = vector.broadcast %20 : vector<1x128xf32> to vector<4x128xf32>
    %33 = arith.mulf %32, %25 : vector<4x128xf32>
    %34 = arith.addf %19, %33 : vector<4x128xf32>
    %35 = vector.broadcast %21 : vector<1x128xf32> to vector<4x128xf32>
    %36 = arith.mulf %35, %23 : vector<4x128xf32>
    %37 = arith.addf %34, %36 : vector<4x128xf32>
    %38 = vector.extract_strided_slice %1 {offsets = [2, 0], sizes = [1, 128], strides = [1, 1]} : vector<4x128xf32> to vector<1x128xf32>
    %39 = vector.extract_strided_slice %3 {offsets = [2, 0], sizes = [1, 128], strides = [1, 1]} : vector<4x128xf32> to vector<1x128xf32>
    %c0_22 = arith.constant 0 : index
    %c2 = arith.constant 2 : index
    %c0_23 = arith.constant 0 : index
    %c0_24 = arith.constant 0 : index
    %40 = vector.load %arg4[%c0_22, %c2, %c0_23, %c0_24] : memref<2x4x4x128xf32, #tpu.memory_space<vmem>>, vector<1x1x4x128xf32>
    %41 = vector.shape_cast %40 : vector<1x1x4x128xf32> to vector<4x128xf32>
    %c1_25 = arith.constant 1 : index
    %c2_26 = arith.constant 2 : index
    %c0_27 = arith.constant 0 : index
    %c0_28 = arith.constant 0 : index
    %42 = vector.load %arg4[%c1_25, %c2_26, %c0_27, %c0_28] : memref<2x4x4x128xf32, #tpu.memory_space<vmem>>, vector<1x1x4x128xf32>
    %43 = vector.shape_cast %42 : vector<1x1x4x128xf32> to vector<4x128xf32>
    %44 = vector.broadcast %38 : vector<1x128xf32> to vector<4x128xf32>
    %45 = arith.mulf %44, %41 : vector<4x128xf32>
    %46 = arith.addf %31, %45 : vector<4x128xf32>
    %47 = vector.broadcast %39 : vector<1x128xf32> to vector<4x128xf32>
    %48 = arith.mulf %47, %43 : vector<4x128xf32>
    %49 = arith.subf %46, %48 : vector<4x128xf32>
    %50 = vector.broadcast %38 : vector<1x128xf32> to vector<4x128xf32>
    %51 = arith.mulf %50, %43 : vector<4x128xf32>
    %52 = arith.addf %37, %51 : vector<4x128xf32>
    %53 = vector.broadcast %39 : vector<1x128xf32> to vector<4x128xf32>
    %54 = arith.mulf %53, %41 : vector<4x128xf32>
    %55 = arith.addf %52, %54 : vector<4x128xf32>
    %56 = vector.extract_strided_slice %1 {offsets = [3, 0], sizes = [1, 128], strides = [1, 1]} : vector<4x128xf32> to vector<1x128xf32>
    %57 = vector.extract_strided_slice %3 {offsets = [3, 0], sizes = [1, 128], strides = [1, 1]} : vector<4x128xf32> to vector<1x128xf32>
    %c0_29 = arith.constant 0 : index
    %c3 = arith.constant 3 : index
    %c0_30 = arith.constant 0 : index
    %c0_31 = arith.constant 0 : index
    %58 = vector.load %arg4[%c0_29, %c3, %c0_30, %c0_31] : memref<2x4x4x128xf32, #tpu.memory_space<vmem>>, vector<1x1x4x128xf32>
    %59 = vector.shape_cast %58 : vector<1x1x4x128xf32> to vector<4x128xf32>
    %c1_32 = arith.constant 1 : index
    %c3_33 = arith.constant 3 : index
    %c0_34 = arith.constant 0 : index
    %c0_35 = arith.constant 0 : index
    %60 = vector.load %arg4[%c1_32, %c3_33, %c0_34, %c0_35] : memref<2x4x4x128xf32, #tpu.memory_space<vmem>>, vector<1x1x4x128xf32>
    %61 = vector.shape_cast %60 : vector<1x1x4x128xf32> to vector<4x128xf32>
    %62 = vector.broadcast %56 : vector<1x128xf32> to vector<4x128xf32>
    %63 = arith.mulf %62, %59 : vector<4x128xf32>
    %64 = arith.addf %49, %63 : vector<4x128xf32>
    %65 = vector.broadcast %57 : vector<1x128xf32> to vector<4x128xf32>
    %66 = arith.mulf %65, %61 : vector<4x128xf32>
    %67 = arith.subf %64, %66 : vector<4x128xf32>
    %68 = vector.broadcast %56 : vector<1x128xf32> to vector<4x128xf32>
    %69 = arith.mulf %68, %61 : vector<4x128xf32>
    %70 = arith.addf %55, %69 : vector<4x128xf32>
    %71 = vector.broadcast %57 : vector<1x128xf32> to vector<4x128xf32>
    %72 = arith.mulf %71, %59 : vector<4x128xf32>
    %73 = arith.addf %70, %72 : vector<4x128xf32>
    %c0_i32 = arith.constant 0 : i32
    %74 = arith.cmpi eq, %arg2, %c0_i32 : i32
    %75 = arith.extui %74 : i1 to i32
    %c0_i32_36 = arith.constant 0 : i32
    %76 = arith.cmpi ne, %75, %c0_i32_36 : i32
    scf.if %76 {
      %c0_39 = arith.constant 0 : index
      %c0_40 = arith.constant 0 : index
      %c0_41 = arith.constant 0 : index
      %c0_42 = arith.constant 0 : index
      %80 = vector.load %arg5[%c0_39, %c0_40, %c0_41, %c0_42] : memref<2x1x4x128xf32, #tpu.memory_space<vmem>>, vector<1x1x4x128xf32>
      %81 = vector.shape_cast %80 : vector<1x1x4x128xf32> to vector<4x128xf32>
      %82 = vector.shape_cast %67 : vector<4x128xf32> to vector<1x1x4x128xf32>
      tpu.vector_store %arg5[%c0_39, %c0_40, %c0_41, %c0_42], %82 {strides = array<i32>} : memref<2x1x4x128xf32, #tpu.memory_space<vmem>>, vector<1x1x4x128xf32>,
      %c1_43 = arith.constant 1 : index
      %c0_44 = arith.constant 0 : index
      %c0_45 = arith.constant 0 : index
      %c0_46 = arith.constant 0 : index
      %83 = vector.load %arg5[%c1_43, %c0_44, %c0_45, %c0_46] : memref<2x1x4x128xf32, #tpu.memory_space<vmem>>, vector<1x1x4x128xf32>
      %84 = vector.shape_cast %83 : vector<1x1x4x128xf32> to vector<4x128xf32>
      %85 = vector.shape_cast %73 : vector<4x128xf32> to vector<1x1x4x128xf32>
      tpu.vector_store %arg5[%c1_43, %c0_44, %c0_45, %c0_46], %85 {strides = array<i32>} : memref<2x1x4x128xf32, #tpu.memory_space<vmem>>, vector<1x1x4x128xf32>,
    } else {
    }
    %c0_i32_37 = arith.constant 0 : i32
    %77 = arith.cmpi sgt, %arg2, %c0_i32_37 : i32
    %78 = arith.extui %77 : i1 to i32
    %c0_i32_38 = arith.constant 0 : i32
    %79 = arith.cmpi ne, %78, %c0_i32_38 : i32
    scf.if %79 {
      %c0_39 = arith.constant 0 : index
      %c0_40 = arith.constant 0 : index
      %c0_41 = arith.constant 0 : index
      %c0_42 = arith.constant 0 : index
      %80 = vector.load %arg5[%c0_39, %c0_40, %c0_41, %c0_42] : memref<2x1x4x128xf32, #tpu.memory_space<vmem>>, vector<1x1x4x128xf32>
      %81 = vector.shape_cast %80 : vector<1x1x4x128xf32> to vector<4x128xf32>
      %82 = arith.addf %81, %67 : vector<4x128xf32>
      %c0_43 = arith.constant 0 : index
      %c0_44 = arith.constant 0 : index
      %c0_45 = arith.constant 0 : index
      %c0_46 = arith.constant 0 : index
      %83 = vector.load %arg5[%c0_43, %c0_44, %c0_45, %c0_46] : memref<2x1x4x128xf32, #tpu.memory_space<vmem>>, vector<1x1x4x128xf32>
      %84 = vector.shape_cast %83 : vector<1x1x4x128xf32> to vector<4x128xf32>
      %85 = vector.shape_cast %82 : vector<4x128xf32> to vector<1x1x4x128xf32>
      tpu.vector_store %arg5[%c0_43, %c0_44, %c0_45, %c0_46], %85 {strides = array<i32>} : memref<2x1x4x128xf32, #tpu.memory_space<vmem>>, vector<1x1x4x128xf32>,
      %c1_47 = arith.constant 1 : index
      %c0_48 = arith.constant 0 : index
      %c0_49 = arith.constant 0 : index
      %c0_50 = arith.constant 0 : index
      %86 = vector.load %arg5[%c1_47, %c0_48, %c0_49, %c0_50] : memref<2x1x4x128xf32, #tpu.memory_space<vmem>>, vector<1x1x4x128xf32>
      %87 = vector.shape_cast %86 : vector<1x1x4x128xf32> to vector<4x128xf32>
      %88 = arith.addf %87, %73 : vector<4x128xf32>
      %c1_51 = arith.constant 1 : index
      %c0_52 = arith.constant 0 : index
      %c0_53 = arith.constant 0 : index
      %c0_54 = arith.constant 0 : index
      %89 = vector.load %arg5[%c1_51, %c0_52, %c0_53, %c0_54] : memref<2x1x4x128xf32, #tpu.memory_space<vmem>>, vector<1x1x4x128xf32>
      %90 = vector.shape_cast %89 : vector<1x1x4x128xf32> to vector<4x128xf32>
      %91 = vector.shape_cast %88 : vector<4x128xf32> to vector<1x1x4x128xf32>
      tpu.vector_store %arg5[%c1_51, %c0_52, %c0_53, %c0_54], %91 {strides = array<i32>} : memref<2x1x4x128xf32, #tpu.memory_space<vmem>>, vector<1x1x4x128xf32>,
    } else {
    }
    return
  }
  func.func @transform_0(%arg0: i32, %arg1: i32, %arg2: i32) -> (i32, i32, i32, i32) {
    %c0_i32 = arith.constant 0 : i32
    %c0_i32_0 = arith.constant 0 : i32
    return %c0_i32, %arg1, %arg2, %arg0 : i32, i32, i32, i32
  }
  func.func @transform_1(%arg0: i32, %arg1: i32, %arg2: i32) -> (i32, i32, i32, i32) {
    %c0_i32 = arith.constant 0 : i32
    %c0_i32_0 = arith.constant 0 : i32
    %c0_i32_1 = arith.constant 0 : i32
    return %c0_i32, %arg2, %c0_i32_0, %arg0 : i32, i32, i32, i32
  }
  func.func @transform_2(%arg0: i32, %arg1: i32, %arg2: i32) -> (i32, i32, i32, i32) {
    %c0_i32 = arith.constant 0 : i32
    %c0_i32_0 = arith.constant 0 : i32
    %c0_i32_1 = arith.constant 0 : i32
    return %c0_i32, %arg1, %c0_i32_0, %arg0 : i32, i32, i32, i32
  }
}

</mosaic_0001>

<llo_original>
// kernel: tpu_custom_call.1
$region0: #{tpu_custom_call.1}
  #allocation0 [shape = 'u32[]', space=smem, size = 0x4, offset = 0x4, fixed_abs, tag = 'smem constant byte address 0x4 - core index']
  #allocation1 [shape = 'u32[144,128]{1,0:T(1,128)}', space=vmem, size = 0x12000, scoped, tag = 'internal scratch']
  %s0 = inlined_call_operand.hbm [shape: f32[2,2,4,128], index: 0, kind: input, shape index: {}]
  %s1 = inlined_call_operand.hbm [shape: f32[2,4,4,128], index: 1, kind: input, shape index: {}]
  %s2 = inlined_call_operand.hbm [shape: f32[2,2,4,128], index: 2, kind: output, shape index: {}]
  %s3 = sld [smem:[#allocation0]]
  $region57: #{tpu_custom_call.1} parent=0
    _
  %s5 = ssub.s32 1, %s3
  %s6 = scalar_select 0, %s5, %s3
  $region1: #{tpu_custom_call.1} parent=0
    #allocation2 [shape = 'u8[8192]{0}', space=vmem, size = 0x2000, scoped, tag = 'input window, operand 0']
    #allocation3 [shape = 's32[2]{0}', space=sflag, size = 0x8, scoped, tag = 'scoped memory for tpu_custom_call.1']
    #allocation4 [shape = 's32[2]{0}', space=sflag, size = 0x8, scoped, tag = 'scoped memory for tpu_custom_call.1']
    #allocation5 [shape = 'u8[16384]{0}', space=vmem, size = 0x4000, scoped, tag = 'input window, operand 1, single buffered']
    #allocation6 [shape = 's32[1]{0}', space=sflag, size = 0x4, scoped, tag = 'scoped memory for tpu_custom_call.1']
    #allocation7 [shape = 'u8[8192]{0}', space=vmem, size = 0x2000, scoped, tag = 'output window, operand 0']
    %7 = vsyncpa [#allocation3], 0
    %s8 = scalar_lea.sflag [#allocation3], 1
    %9 = vsyncpa %s8, 0
    %10 = vsyncpa [#allocation6], 0
    %11 = vsyncpa [#allocation4], 0
    %s12 = scalar_lea.sflag [#allocation4], 1
    %13 = vsyncpa %s12, 0
    loop: start=0, step=1, limit=4
    $region2: #{tpu_custom_call.1} parent=1 // loop_pre_header
      _
    $region3: #{tpu_custom_call.1} parent=1 // loop_header
      %s15 = sphi 0, %s19
      %p16 = scmp.ge.s32.totalorder %s15, 4
      %s22 = sphi 0, %s41
      %s23 = sphi 0, %s37
      %s24 = sphi 0, %s33
      %s25 = sphi 0, %s22
      %s26 = sphi 0, %s23
      %s27 = sphi 0, %s24
      %s28 = sphi 0, %s25
      %s29 = sphi 0, %s26
      %s30 = sphi 0, %s27
      %s48 = sphi 0, %s50
      %s51 = sphi 0, %s48
      %s52 = sphi 0, %s51
      %s68 = sphi 0, %s52
      %s76 = sphi 0, %s78
      %s79 = sphi 0, %s76
      %s80 = sphi 0, %s79
      %s96 = sphi 0, %s80
      %s104 = sphi 0, %s106
      %s107 = sphi 0, %s104
      %s108 = sphi 0, %s107
      %s124 = sphi 0, %s108
    $region4: #{tpu_custom_call.1} parent=1 // loop_header_branch
      %18 = sbr.rel (%p16) target = $region8
    $region5: #{tpu_custom_call.1} parent=1 // loop_body
      %s20 = ssub.s32 %s15, 1
      %s21 = ssub.s32 %s15, 2
      %s31 = sadd.s32 1, %s24
      %p32 = scmp.ge.s32.totalorder %s31, 1
      %s33 = scalar_select %p32, 0, %s31
      %s34 = sadd.s32 1, %s23
      %s35 = scalar_select %p32, %s34, %s23
      %p36 = scmp.ge.s32.totalorder %s35, 2
      %s37 = scalar_select %p36, 0, %s35
      %s38 = sadd.s32 1, %s22
      %s39 = scalar_select %p36, %s38, %s22
      %p40 = scmp.ge.s32.totalorder %s39, 1
      %s41 = scalar_select %p40, 0, %s39
      %s42 = ssub.s32 %s23, %s37
      %s43 = ssub.s32 %s24, %s33
      %s44 = sor.u32 %s42, %s43
      %s45 = ssub.s32 %s22, %s41
      %s46 = sor.u32 %s44, %s45
      %p47 = scmp.eq.s32.totalorder %s46, 0
      %s49 = sadd.s32 %s48, 1
      %s50 = scalar_select %p47, %s48, %s49
      %p53 = pneg %p47
      %p54 = scmp.eq.s32.totalorder %s15, 1
      %p55 = por %p53, %p54
      %p56 = scmp.ne.s32.totalorder %s48, %s51
      %p57 = scmp.eq.s32.totalorder %s15, 0
      %p58 = por %p56, %p57
      %p59 = scmp.ne.s32.totalorder %s48, %s51
      %p60 = scmp.eq.s32.totalorder %s20, 1
      %p61 = por %p59, %p60
      %p62 = scmp.ne.s32.totalorder %s51, %s52
      %p63 = scmp.eq.s32.totalorder %s20, 0
      %p64 = por %p62, %p63
      %p65 = scmp.ne.s32.totalorder %s51, %s52
      %p66 = scmp.eq.s32.totalorder %s21, 1
      %p67 = por %p65, %p66
      %p69 = scmp.ne.s32.totalorder %s52, %s68
      %p70 = scmp.eq.s32.totalorder %s21, 0
      %p71 = por %p69, %p70
      %s72 = ssub.s32 %s24, %s33
      %s73 = ssub.s32 %s22, %s41
      %s74 = sor.u32 %s72, %s73
      %p75 = scmp.eq.s32.totalorder %s74, 0
      %s77 = sadd.s32 %s76, 1
      %s78 = scalar_select %p75, %s76, %s77
      %p81 = pneg %p75
      %p82 = scmp.eq.s32.totalorder %s15, 1
      %p83 = por %p81, %p82
      %p84 = scmp.ne.s32.totalorder %s76, %s79
      %p85 = scmp.eq.s32.totalorder %s15, 0
      %p86 = por %p84, %p85
      %p87 = scmp.ne.s32.totalorder %s76, %s79
      %p88 = scmp.eq.s32.totalorder %s20, 1
      %p89 = por %p87, %p88
      %p90 = scmp.ne.s32.totalorder %s79, %s80
      %p91 = scmp.eq.s32.totalorder %s20, 0
      %p92 = por %p90, %p91
      %p93 = scmp.ne.s32.totalorder %s79, %s80
      %p94 = scmp.eq.s32.totalorder %s21, 1
      %p95 = por %p93, %p94
      %p97 = scmp.ne.s32.totalorder %s80, %s96
      %p98 = scmp.eq.s32.totalorder %s21, 0
      %p99 = por %p97, %p98
      %s100 = ssub.s32 %s23, %s37
      %s101 = ssub.s32 %s22, %s41
      %s102 = sor.u32 %s100, %s101
      %p103 = scmp.eq.s32.totalorder %s102, 0
      %s105 = sadd.s32 %s104, 1
      %s106 = scalar_select %p103, %s104, %s105
      %p109 = pneg %p103
      %p110 = scmp.eq.s32.totalorder %s15, 1
      %p111 = por %p109, %p110
      %p112 = scmp.ne.s32.totalorder %s104, %s107
      %p113 = scmp.eq.s32.totalorder %s15, 0
      %p114 = por %p112, %p113
      %p115 = scmp.ne.s32.totalorder %s104, %s107
      %p116 = scmp.eq.s32.totalorder %s20, 1
      %p117 = por %p115, %p116
      %p118 = scmp.ne.s32.totalorder %s107, %s108
      %p119 = scmp.eq.s32.totalorder %s20, 0
      %p120 = por %p118, %p119
      %p121 = scmp.ne.s32.totalorder %s107, %s108
      %p122 = scmp.eq.s32.totalorder %s21, 1
      %p123 = por %p121, %p122
      %p125 = scmp.ne.s32.totalorder %s108, %s124
      %p126 = scmp.eq.s32.totalorder %s21, 0
      %p127 = por %p125, %p126
      %p128 = scmp.le.s32.totalorder 1, %s15
      %p129 = scmp.lt.s32.totalorder %s15, 3
      %p130 = pnand %p128, %p129
      %p131 = pneg %p130
      // Predicated region
      $region9: #{tpu_custom_call.1} parent=5 // pred_check
        _
      $region10: #{tpu_custom_call.1} parent=5 // pred_check_branch
        %133 = sbr.rel (%p130) target = $region12
      $region11: #{tpu_custom_call.1} parent=5 // pred_region
        %s134 = ssub.s32 %s15, 1
        // Predicated region
        $region13: #{tpu_custom_call.1} parent=11 // pred_check
          %p135 = pneg %p92
        $region14: #{tpu_custom_call.1} parent=11 // pred_check_branch
          %137 = sbr.rel (%p135) target = $region16
        $region15: #{tpu_custom_call.1} parent=11 // pred_region
          %s138 = smul.u32 4, %s27
          %s140 = ssub.s32 512, 512
          %141 = vsyncadd [#allocation6], %s140
          %s142 = sadd.s32 %s25, %s138
          %s143 = smul.addr %s142, 64
          %s144 = scalar_lea.hbm %s1, %s143
          %s145 = sshll.u32 [#allocation5], 4
          %s146 = int_to_ptr.vmem [resolvable:$true] %s145
          %151 = dma.hbm_to_vmem [thread:$0]  %s144, 512, %s146, [#allocation6], 64, 64, 4
        $region16: #{tpu_custom_call.1} parent=11 // pred_fallthru
          _
      $region12: #{tpu_custom_call.1} parent=5 // pred_fallthru
        _
      %p152 = scmp.lt.s32.totalorder %s15, 2
      // Predicated region
      $region17: #{tpu_custom_call.1} parent=5 // pred_check
        %p153 = pneg %p152
      $region18: #{tpu_custom_call.1} parent=5 // pred_check_branch
        %155 = sbr.rel (%p153) target = $region20
      $region19: #{tpu_custom_call.1} parent=5 // pred_region
        // Predicated region
        $region21: #{tpu_custom_call.1} parent=19 // pred_check
          %p156 = pneg %p58
        $region22: #{tpu_custom_call.1} parent=19 // pred_check_branch
          %158 = sbr.rel (%p156) target = $region24
        $region23: #{tpu_custom_call.1} parent=19 // pred_region
          %s159 = sand.u32 %s48, 1
          %s160 = scalar_lea.sflag [#allocation3], %s159
          %s161 = sand.u32 %s48, 1
          %s162 = smul.addr %s161, 8
          %s163 = scalar_lea.vmem [#allocation2], %s162
          %s165 = ssub.s32 128, 128
          %166 = vsyncadd %s160, %s165
          %s167 = sadd.s32 %s22, %s24
          %s168 = sadd.s32 %s167, %s23
          %s169 = smul.addr %s168, 64
          %s170 = scalar_lea.hbm %s0, %s169
          %s171 = sshll.u32 %s163, 4
          %s172 = int_to_ptr.vmem [resolvable:$true] %s171
          %177 = dma.hbm_to_vmem [thread:$0]  %s170, 128, %s172, %s160, 128, 64, 4
        $region24: #{tpu_custom_call.1} parent=19 // pred_fallthru
          _
      $region20: #{tpu_custom_call.1} parent=5 // pred_fallthru
        _
      %p178 = scmp.le.s32.totalorder 1, %s15
      %p179 = scmp.lt.s32.totalorder %s15, 3
      %p180 = pnand %p178, %p179
      %p181 = pneg %p180
      // Predicated region
      $region25: #{tpu_custom_call.1} parent=5 // pred_check
        _
      $region26: #{tpu_custom_call.1} parent=5 // pred_check_branch
        %183 = sbr.rel (%p180) target = $region28
      $region27: #{tpu_custom_call.1} parent=5 // pred_region
        %s184 = ssub.s32 %s15, 1
        %s185 = sand.u32 %s51, 1
        %s186 = scalar_lea.sflag [#allocation3], %s185
        %s187 = sand.u32 %s51, 1
        %s188 = smul.addr %s187, 8
        %s189 = scalar_lea.vmem [#allocation2], %s188
        // Predicated region
        $region29: #{tpu_custom_call.1} parent=27 // pred_check
          %p190 = pneg %p64
        $region30: #{tpu_custom_call.1} parent=27 // pred_check_branch
          %192 = sbr.rel (%p190) target = $region32
        $region31: #{tpu_custom_call.1} parent=27 // pred_region
          %193 = dma.done %s186, 128
        $region32: #{tpu_custom_call.1} parent=27 // pred_fallthru
          _
        // Predicated region
        $region33: #{tpu_custom_call.1} parent=27 // pred_check
          %p194 = pneg %p92
        $region34: #{tpu_custom_call.1} parent=27 // pred_check_branch
          %196 = sbr.rel (%p194) target = $region36
        $region35: #{tpu_custom_call.1} parent=27 // pred_region
          %197 = dma.done [#allocation6], 512
        $region36: #{tpu_custom_call.1} parent=27 // pred_fallthru
          _
        %s198 = sand.u32 %s51, 1
        %s199 = scalar_lea.sflag [#allocation3], %s198
        %s200 = sand.u32 %s51, 1
        %s201 = smul.addr %s200, 8
        %s202 = scalar_lea.vmem [#allocation2], %s201
        %p203 = pneg %p64
        %p204 = pneg %p61
        %p205 = pneg %p92
        %p206 = pneg %p89
        %p207 = pneg %p120
        %p208 = pneg %p117
        %s209 = sand.u32 %s107, 1
        %s210 = scalar_lea.sflag [#allocation4], %s209
        %s211 = sand.u32 %s107, 1
        %s212 = smul.addr %s211, 8
        %s213 = scalar_lea.vmem [#allocation7], %s212
        %s214 = smul.u32 4, %s27
        %v215 = vld [vmem:[%s189] sm:$0xf]
        %s216 = scalar_lea.vmem %s189, 4 [#allocation2]
        %v217 = vld [vmem:[%s216] sm:$0xf]
        %v218 = vld [vmem:[#allocation5] sm:$0xf]
        %s219 = scalar_lea.vmem [#allocation5], 16
        %v220 = vld [vmem:[%s219] sm:$0xf]
        %v221 = vlaneseq
        %v222 = vshrl.u32 %v221, 7
        %v223 = vsub.s32 0, %v222
        %v224 = vrot.slane %v215, %v223
        %v225 = vmul.f32 %v224, %v218
        %v226 = vlaneseq
        %v227 = vshrl.u32 %v226, 7
        %v228 = vsub.s32 0, %v227
        %v229 = vrot.slane %v217, %v228
        %v230 = vmul.f32 %v229, %v220
        %v231 = vsub.f32 %v225, %v230
        %v232 = vmul.f32 %v224, %v220
        %v233 = vmul.f32 %v229, %v218
        %v234 = vadd.f32 %v232, %v233
        %s235 = scalar_lea.vmem [#allocation5], 4
        %v236 = vld [vmem:[%s235] sm:$0xf]
        %s237 = scalar_lea.vmem [#allocation5], 20
        %v238 = vld [vmem:[%s237] sm:$0xf]
        %v239 = vlaneseq
        %v240 = vshrl.u32 %v239, 7
        %v241 = vsub.s32 1, %v240
        %v242 = vrot.slane %v215, %v241
        %v243 = vmul.f32 %v242, %v236
        %v244 = vadd.f32 %v231, %v243
        %v245 = vlaneseq
        %v246 = vshrl.u32 %v245, 7
        %v247 = vsub.s32 1, %v246
        %v248 = vrot.slane %v217, %v247
        %v249 = vmul.f32 %v248, %v238
        %v250 = vsub.f32 %v244, %v249
        %v251 = vmul.f32 %v242, %v238
        %v252 = vadd.f32 %v234, %v251
        %v253 = vmul.f32 %v248, %v236
        %v254 = vadd.f32 %v252, %v253
        %s255 = scalar_lea.vmem [#allocation5], 8
        %v256 = vld [vmem:[%s255] sm:$0xf]
        %s257 = scalar_lea.vmem [#allocation5], 24
        %v258 = vld [vmem:[%s257] sm:$0xf]
        %v259 = vlaneseq
        %v260 = vshrl.u32 %v259, 7
        %v261 = vsub.s32 2, %v260
        %v262 = vrot.slane %v215, %v261
        %v263 = vmul.f32 %v262, %v256
        %v264 = vadd.f32 %v250, %v263
        %v265 = vlaneseq
        %v266 = vshrl.u32 %v265, 7
        %v267 = vsub.s32 2, %v266
        %v268 = vrot.slane %v217, %v267
        %v269 = vmul.f32 %v268, %v258
        %v270 = vsub.f32 %v264, %v269
        %v271 = vmul.f32 %v262, %v258
        %v272 = vadd.f32 %v254, %v271
        %v273 = vmul.f32 %v268, %v256
        %v274 = vadd.f32 %v272, %v273
        %s275 = scalar_lea.vmem [#allocation5], 12
        %v276 = vld [vmem:[%s275] sm:$0xf]
        %s277 = scalar_lea.vmem [#allocation5], 28
        %v278 = vld [vmem:[%s277] sm:$0xf]
        %v279 = vlaneseq
        %v280 = vshrl.u32 %v279, 7
        %v281 = vsub.s32 3, %v280
        %v282 = vrot.slane %v215, %v281
        %v283 = vmul.f32 %v282, %v276
        %v284 = vadd.f32 %v270, %v283
        %v285 = vlaneseq
        %v286 = vshrl.u32 %v285, 7
        %v287 = vsub.s32 3, %v286
        %v288 = vrot.slane %v217, %v287
        %v289 = vmul.f32 %v288, %v278
        %v290 = vsub.f32 %v284, %v289
        %v291 = vmul.f32 %v282, %v278
        %v292 = vadd.f32 %v274, %v291
        %v293 = vmul.f32 %v288, %v276
        %v294 = vadd.f32 %v292, %v293
        %p295 = scmp.eq.s32.totalorder %s27, 0
        // Predicated region
        $region37: #{tpu_custom_call.1} parent=27 // pred_check
          %p296 = pneg %p295
        $region38: #{tpu_custom_call.1} parent=27 // pred_check_branch
          %298 = sbr.rel (%p296) target = $region40
        $region39: #{tpu_custom_call.1} parent=27 // pred_region
          %299 = vst [vmem:[%s213] sm:$0xf] %v290
          %s300 = scalar_lea.vmem %s213, 4 [#allocation7]
          %301 = vst [vmem:[%s300] sm:$0xf] %v294
        $region40: #{tpu_custom_call.1} parent=27 // pred_fallthru
          _
        %p302 = scmp.gt.s32.totalorder %s27, 0
        // Predicated region
        $region41: #{tpu_custom_call.1} parent=27 // pred_check
          %p303 = pneg %p302
        $region42: #{tpu_custom_call.1} parent=27 // pred_check_branch
          %305 = sbr.rel (%p303) target = $region44
        $region43: #{tpu_custom_call.1} parent=27 // pred_region
          %v306 = vld [vmem:[%s213] sm:$0xf]
          %v307 = vadd.f32 %v306, %v290
          %308 = vst [vmem:[%s213] sm:$0xf] %v307
          %s309 = scalar_lea.vmem %s213, 4 [#allocation7]
          %v310 = vld [vmem:[%s309] sm:$0xf]
          %v311 = vadd.f32 %v310, %v294
          %312 = vst [vmem:[%s309] sm:$0xf] %v311
        $region44: #{tpu_custom_call.1} parent=27 // pred_fallthru
          _
        %s313 = sand.u32 %s107, 1
        %s314 = scalar_lea.sflag [#allocation4], %s313
        %s315 = sand.u32 %s107, 1
        %s316 = smul.addr %s315, 8
        %s317 = scalar_lea.vmem [#allocation7], %s316
        // Predicated region
        $region45: #{tpu_custom_call.1} parent=27 // pred_check
          %p318 = pneg %p117
        $region46: #{tpu_custom_call.1} parent=27 // pred_check_branch
          %320 = sbr.rel (%p318) target = $region48
        $region47: #{tpu_custom_call.1} parent=27 // pred_region
          %s322 = ssub.s32 128, 128
          %323 = vsyncadd %s314, %s322
          %s324 = sadd.s32 %s25, %s26
          %s325 = smul.addr %s324, 64
          %s326 = scalar_lea.hbm %s2, %s325
          %s327 = sshll.u32 %s317, 4
          %s328 = int_to_ptr.vmem [resolvable:$true] %s327
          %333 = dma.vmem_to_hbm [thread:$0]  %s328, 128, %s326, %s314, 64, 128, 4
        $region48: #{tpu_custom_call.1} parent=27 // pred_fallthru
          _
      $region28: #{tpu_custom_call.1} parent=5 // pred_fallthru
        _
      %p334 = scmp.le.s32.totalorder 2, %s15
      // Predicated region
      $region49: #{tpu_custom_call.1} parent=5 // pred_check
        %p335 = pneg %p334
      $region50: #{tpu_custom_call.1} parent=5 // pred_check_branch
        %337 = sbr.rel (%p335) target = $region52
      $region51: #{tpu_custom_call.1} parent=5 // pred_region
        %s338 = ssub.s32 %s15, 2
        // Predicated region
        $region53: #{tpu_custom_call.1} parent=51 // pred_check
          %p339 = pneg %p123
        $region54: #{tpu_custom_call.1} parent=51 // pred_check_branch
          %341 = sbr.rel (%p339) target = $region56
        $region55: #{tpu_custom_call.1} parent=51 // pred_region
          %s342 = sand.u32 %s108, 1
          %s343 = scalar_lea.sflag [#allocation4], %s342
          %s344 = sand.u32 %s108, 1
          %s345 = smul.addr %s344, 8
          %s346 = scalar_lea.vmem [#allocation7], %s345
          %347 = dma.done %s343, 128
        $region56: #{tpu_custom_call.1} parent=51 // pred_fallthru
          _
      $region52: #{tpu_custom_call.1} parent=5 // pred_fallthru
        _
    $region6: #{tpu_custom_call.1} parent=1 // loop_footer
      %s19 = sadd.s32 1, %s15
    $region7: #{tpu_custom_call.1} parent=1 // loop_footer_branch
      %14 = sbr.rel target = $region3
    $region8: #{tpu_custom_call.1} parent=1 // loop_exit
      _
    %348 = vsyncpa [#allocation3], 1
    %s349 = scalar_lea.sflag [#allocation3], 1
    %350 = vsyncpa %s349, 1
    %351 = vsyncpa [#allocation6], 1
    %352 = vsyncpa [#allocation4], 1
    %s353 = scalar_lea.sflag [#allocation4], 1
    %354 = vsyncpa %s353, 1

</llo_original>
